<compile_context>
chip_gen: v5e
topology: v5e:2x2
jax: 0.10.0
libtpu: 0.0.40
codegen_flags: <defaults>
</compile_context>

<pallas_src>
import functools

import jax
import jax.numpy as jnp
from jax.experimental import pallas as pl
from jax.experimental.pallas import tpu as pltpu

ALPHA = 0.3  # opt.alpha


def _round_up(x, m):
    return ((x + m - 1) // m) * m


def _choose_tiles(M, N, tm_cap=512, tn_cap=1024):
    """Pick (tm, tn): tm multiple of 32 (int8-safe), tn multiple of 128, no inflated
    coverage. Blocks may overhang the array (ragged edge is masked in-kernel)."""
    tm = min(_round_up(M, 32), tm_cap)
    best_tn, best_waste = 128, None
    t = 128
    while t <= tn_cap:
        waste = _round_up(N, t) - N          # columns covered but unused
        if best_waste is None or waste < best_waste or (waste == best_waste and t > best_tn):
            best_tn, best_waste = t, waste
        t += 128
    return tm, best_tn


def _apply_edge_mask(p, M, N, tm, tn, mask_rows, mask_cols):
    # Select (not multiply) so garbage in out-of-bounds lanes cannot poison the sum.
    if not (mask_rows or mask_cols):
        return p
    valid = None
    if mask_rows:
        rows = pl.program_id(0) * tm + jax.lax.broadcasted_iota(jnp.int32, (tm, tn), 0)
        valid = rows < M
    if mask_cols:
        cols = pl.program_id(1) * tn + jax.lax.broadcasted_iota(jnp.int32, (tm, tn), 1)
        vc = cols < N
        valid = vc if valid is None else (valid & vc)
    return jnp.where(valid, p, 0.0)


def _wmse_fast_kernel(inp_ref, tgt_ref, out_ref, *, M, N, tm, tn, mask_rows, mask_cols):
    """2-stream fast path: weight derived from target in-kernel."""
    @pl.when(pl.program_id(1) == 0)
    def _():
        out_ref[...] = jnp.zeros_like(out_ref)

    x = inp_ref[...].astype(jnp.float32)
    t = tgt_ref[...].astype(jnp.float32)
    d = x - t
    # (1-alpha) where target==1, alpha where target==0, 0 elsewhere -> identical to
    # gathering at where(target==1) / where(target==0) and summing.
    w = jnp.where(t == 1.0, 1.0 - ALPHA, jnp.where(t == 0.0, ALPHA, 0.0))
    p = d * d * w
    p = _apply_edge_mask(p, M, N, tm, tn, mask_rows, mask_cols)

    # Fold sublane groups: (tm, tn) -> (tm//8, 8, tn) -> pure-VPU adds into (8, tn).
    out_ref[...] += p.reshape(tm // 8, 8, tn).sum(axis=0)


def _wmse_count_kernel(inp_ref, tgt_ref, c1_ref, c0_ref, out_ref,
                       *, M, N, tm, tn, mask_rows, mask_cols):
    """General path: exact w.r.t. arbitrary / duplicated index tuples via int8 counts."""
    @pl.when(pl.program_id(1) == 0)
    def _():
        out_ref[...] = jnp.zeros_like(out_ref)

    x = inp_ref[...].astype(jnp.float32)
    t = tgt_ref[...].astype(jnp.float32)
    d = x - t
    w = ((1.0 - ALPHA) * c1_ref[...].astype(jnp.float32)
         + ALPHA * c0_ref[...].astype(jnp.float32))
    p = d * d * w
    p = _apply_edge_mask(p, M, N, tm, tn, mask_rows, mask_cols)

    out_ref[...] += p.reshape(tm // 8, 8, tn).sum(axis=0)


def myloss_wmse(inp, tgt, one_index, zero_index, contrast_index=None,
                *, indices_from_target=True):
    """inp, tgt: (M, N) arrays (f32 or bf16).  one_index / zero_index: tuples of int
    arrays (as produced by jnp.where / torch advanced indexing).

    indices_from_target=True  -> assumes one_index == where(tgt==1), zero_index ==
                                 where(tgt==0) (how the training script builds them);
                                 streams only inp and tgt.
    indices_from_target=False -> fully general, duplicate-index-exact path using two
                                 int8 count maps.
    """
    del contrast_index  # unused in the WMSE branch
    M, N = inp.shape

    tm, tn = _choose_tiles(M, N)
    nr = pl.cdiv(M, tm)
    nc = pl.cdiv(N, tn)
    mask_rows = (M % tm) != 0
    mask_cols = (N % tn) != 0

    blk = pl.BlockSpec((tm, tn), lambda r, c: (r, c))
    out_spec = pl.BlockSpec((8, tn), lambda r, c: (r, 0))

    isz = lambda a: jnp.dtype(a.dtype).itemsize
    common = dict(M=M, N=N, tm=tm, tn=tn, mask_rows=mask_rows, mask_cols=mask_cols)

    if indices_from_target:
        operands = (inp, tgt)
        kernel = functools.partial(_wmse_fast_kernel, **common)
        in_specs = [blk, blk]
        bytes_accessed = M * N * (isz(inp) + isz(tgt))
    else:
        # Exact per-element counts (duplicates counted), int8 to minimize HBM bytes.
        c1 = jnp.zeros((M, N), jnp.int32).at[one_index].add(1).astype(jnp.int8)
        c0 = jnp.zeros((M, N), jnp.int32).at[zero_index].add(1).astype(jnp.int8)
        operands = (inp, tgt, c1, c0)
        kernel = functools.partial(_wmse_count_kernel, **common)
        in_specs = [blk, blk, blk, blk]
        bytes_accessed = M * N * (isz(inp) + isz(tgt) + 2)

    partials = pl.pallas_call(
        kernel,
        out_shape=jax.ShapeDtypeStruct((nr * 8, tn), jnp.float32),
        grid_spec=pltpu.PrefetchScalarGridSpec(
            num_scalar_prefetch=0,
            grid=(nr, nc),
            in_specs=in_specs,
            out_specs=out_spec,
        ),
        compiler_params=pltpu.CompilerParams(
            dimension_semantics=("parallel", "arbitrary"),
            vmem_limit_bytes=32 * 1024 * 1024,
        ),
        cost_estimate=pl.CostEstimate(
            flops=4 * M * N,
            transcendentals=0,
            bytes_accessed=int(bytes_accessed) + nr * 8 * tn * 4,
        ),
    )(*operands)

    # Single tiny cross-lane reduction of the (nr*8, tn) partials.
    return jnp.sum(partials)


def _reference(inp, tgt, one_index, zero_index):
    loss = (inp.astype(jnp.float32) - tgt.astype(jnp.float32)) ** 2
    t1 = (1.0 - ALPHA) * loss[one_index].sum()
    t0 = ALPHA * loss[zero_index].sum()
    return t1 + t0


if __name__ == "__main__":
    key = jax.random.PRNGKey(0)

    def make_case(key, M, N, dtype):
        k1, k2 = jax.random.split(key)
        inp = jax.random.uniform(k1, (M, N), dtype=jnp.float32).astype(dtype)
        tgt = jax.random.bernoulli(k2, p=0.2, shape=(M, N)).astype(jnp.float32)
        one_index = jnp.where(tgt == 1.0)
        zero_index = jnp.where(tgt == 0.0)
        return inp, tgt, one_index, zero_index

    keys = jax.random.split(key, 3)

    # Case 1: tile-aligned f32 association matrix, fast path.
    inp, tgt, oi, zi = make_case(keys[0], 32, 128, jnp.float32)
    out = jax.block_until_ready(myloss_wmse(inp, tgt, oi, zi, oi))
    ref = _reference(inp, tgt, oi, zi)
    assert jnp.allclose(out, ref, rtol=1e-4, atol=1e-4), (out, ref)

    # Case 2: ragged shape (exercises in-kernel edge masking), bf16 input, fast path.
    inp, tgt, oi, zi = make_case(keys[1], 45, 200, jnp.bfloat16)
    out = jax.block_until_ready(myloss_wmse(inp, tgt, oi, zi, oi))
    ref = _reference(inp, tgt, oi, zi)
    assert jnp.allclose(out, ref, rtol=1e-4, atol=1e-4), (out, ref)

    # Case 3: general (count-map) path with duplicated indices, ragged shape.
    inp, tgt, oi, zi = make_case(keys[2], 45, 200, jnp.float32)
    oi_dup = tuple(jnp.concatenate([a, a[:3]]) for a in oi)   # duplicates count twice
    out = jax.block_until_ready(
        myloss_wmse(inp, tgt, oi_dup, zi, oi_dup, indices_from_target=False))
    ref = _reference(inp, tgt, oi_dup, zi)
    assert jnp.allclose(out, ref, rtol=1e-4, atol=1e-4), (out, ref)

    print("KERNEL_OK")
</pallas_src>

<mosaic_0001>
module attributes {stable_mosaic.version = 11 : i64} {
  func.func @_wmse_fast_kernel(%arg0: i32, %arg1: i32, %arg2: memref<32x128xf32, #tpu.memory_space<vmem>>, %arg3: memref<32x128xf32, #tpu.memory_space<vmem>>, %arg4: memref<8x128xf32, #tpu.memory_space<vmem>>) attributes {dimension_semantics = [#tpu.dimension_semantics<parallel>, #tpu.dimension_semantics<arbitrary>], iteration_bounds = array<i64: 1, 1>, scalar_prefetch = 0 : i64, scratch_operands = 0 : i64, tpu.core_type = #tpu.core_type<tc>, window_params = [{transform_indices = @transform_0, window_bounds = array<i64: 32, 128>}, {transform_indices = @transform_1, window_bounds = array<i64: 32, 128>}, {transform_indices = @transform_2, window_bounds = array<i64: 8, 128>}]} {
    %c0_i32 = arith.constant 0 : i32
    %0 = arith.cmpi eq, %arg1, %c0_i32 : i32
    %1 = arith.extui %0 : i1 to i32
    %c0_i32_0 = arith.constant 0 : i32
    %2 = arith.cmpi ne, %1, %c0_i32_0 : i32
    scf.if %2 {
      %cst_13 = arith.constant 0.000000e+00 : f32
      %22 = vector.broadcast %cst_13 : f32 to vector<8x128xf32>
      %c0_14 = arith.constant 0 : index
      %c0_15 = arith.constant 0 : index
      %23 = vector.load %arg4[%c0_14, %c0_15] : memref<8x128xf32, #tpu.memory_space<vmem>>, vector<8x128xf32>
      tpu.vector_store %arg4[%c0_14, %c0_15], %22 {strides = array<i32>} : memref<8x128xf32, #tpu.memory_space<vmem>>, vector<8x128xf32>,
    } else {
    }
    %c0 = arith.constant 0 : index
    %c0_1 = arith.constant 0 : index
    %3 = vector.load %arg2[%c0, %c0_1] : memref<32x128xf32, #tpu.memory_space<vmem>>, vector<32x128xf32>
    %c0_2 = arith.constant 0 : index
    %c0_3 = arith.constant 0 : index
    %4 = vector.load %arg3[%c0_2, %c0_3] : memref<32x128xf32, #tpu.memory_space<vmem>>, vector<32x128xf32>
    %5 = arith.subf %3, %4 : vector<32x128xf32>
    %cst = arith.constant 1.000000e+00 : f32
    %6 = vector.broadcast %cst : f32 to vector<32x128xf32>
    %7 = arith.cmpf oeq, %4, %6 : vector<32x128xf32>
    %cst_4 = arith.constant 0.000000e+00 : f32
    %8 = vector.broadcast %cst_4 : f32 to vector<32x128xf32>
    %9 = arith.cmpf oeq, %4, %8 : vector<32x128xf32>
    %cst_5 = arith.constant 3.000000e-01 : f32
    %cst_6 = arith.constant 0.000000e+00 : f32
    %10 = vector.broadcast %cst_5 : f32 to vector<32x128xf32>
    %11 = vector.broadcast %cst_6 : f32 to vector<32x128xf32>
    %12 = arith.select %9, %10, %11 : vector<32x128xi1>, vector<32x128xf32>
    %cst_7 = arith.constant 0.699999988 : f32
    %13 = vector.broadcast %cst_7 : f32 to vector<32x128xf32>
    %14 = arith.select %7, %13, %12 : vector<32x128xi1>, vector<32x128xf32>
    %15 = arith.mulf %5, %5 : vector<32x128xf32>
    %16 = arith.mulf %15, %14 : vector<32x128xf32>
    %c0_8 = arith.constant 0 : index
    %c0_9 = arith.constant 0 : index
    %17 = vector.load %arg4[%c0_8, %c0_9] : memref<8x128xf32, #tpu.memory_space<vmem>>, vector<8x128xf32>
    %18 = vector.shape_cast %16 : vector<32x128xf32> to vector<4x8x128xf32>
    %cst_10 = arith.constant dense<0.000000e+00> : vector<8x128xf32>
    %19 = vector.multi_reduction <add>, %18, %cst_10 [0] : vector<4x8x128xf32> to vector<8x128xf32>
    %20 = arith.addf %17, %19 : vector<8x128xf32>
    %c0_11 = arith.constant 0 : index
    %c0_12 = arith.constant 0 : index
    %21 = vector.load %arg4[%c0_11, %c0_12] : memref<8x128xf32, #tpu.memory_space<vmem>>, vector<8x128xf32>
    tpu.vector_store %arg4[%c0_11, %c0_12], %20 {strides = array<i32>} : memref<8x128xf32, #tpu.memory_space<vmem>>, vector<8x128xf32>,
    return
  }
  func.func @transform_0(%arg0: i32, %arg1: i32) -> (i32, i32) {
    %c0_i32 = arith.constant 0 : i32
    return %arg0, %arg1 : i32, i32
  }
  func.func @transform_1(%arg0: i32, %arg1: i32) -> (i32, i32) {
    %c0_i32 = arith.constant 0 : i32
    return %arg0, %arg1 : i32, i32
  }
  func.func @transform_2(%arg0: i32, %arg1: i32) -> (i32, i32) {
    %c0_i32 = arith.constant 0 : i32
    %c0_i32_0 = arith.constant 0 : i32
    return %arg0, %c0_i32 : i32, i32
  }
}

</mosaic_0001>

<llo_original>
// kernel: tpu_custom_call.1
$region0: #{tpu_custom_call.1}
  #allocation0 [shape = 'u32[]', space=smem, size = 0x4, offset = 0x4, fixed_abs, tag = 'smem constant byte address 0x4 - core index']
  #allocation1 [shape = 'u32[72,128]{1,0:T(1,128)}', space=vmem, size = 0x9000, scoped, tag = 'internal scratch']
  %s0 = inlined_call_operand.hbm [shape: f32[32,128], index: 0, kind: input, shape index: {}]
  %s1 = inlined_call_operand.hbm [shape: f32[32,128], index: 1, kind: input, shape index: {}]
  %s2 = inlined_call_operand.hbm [shape: f32[8,128], index: 2, kind: output, shape index: {}]
  %s3 = sld [smem:[#allocation0]]
  $region30: #{tpu_custom_call.1} parent=0
    _
  %s5 = ssub.s32 1, %s3
  %s6 = scalar_select 0, %s5, %s3
  $region1: #{tpu_custom_call.1} parent=0
    #allocation2 [shape = 'u8[16384]{0}', space=vmem, size = 0x4000, scoped, tag = 'input window, operand 0, single buffered']
    #allocation3 [shape = 's32[1]{0}', space=sflag, size = 0x4, scoped, tag = 'scoped memory for tpu_custom_call.1']
    #allocation4 [shape = 's32[1]{0}', space=sflag, size = 0x4, scoped, tag = 'scoped memory for tpu_custom_call.1']
    #allocation5 [shape = 'u8[16384]{0}', space=vmem, size = 0x4000, scoped, tag = 'input window, operand 1, single buffered']
    #allocation6 [shape = 's32[1]{0}', space=sflag, size = 0x4, scoped, tag = 'scoped memory for tpu_custom_call.1']
    #allocation7 [shape = 'u8[4096]{0}', space=vmem, size = 0x1000, scoped, tag = 'output window, operand 0, single buffered']
    %7 = vsyncpa [#allocation3], 0
    %8 = vsyncpa [#allocation6], 0
    %9 = vsyncpa [#allocation4], 0
    // Predicated region
    $region2: #{tpu_custom_call.1} parent=1 // pred_check
      _
    $region3: #{tpu_custom_call.1} parent=1 // pred_check_branch
      %11 = sbr.rel (0) target = $region5
    $region4: #{tpu_custom_call.1} parent=1 // pred_region
      %13 = vsyncadd [#allocation3], 0
      %s14 = sshll.u32 %s0, 4
      %s15 = int_to_ptr.hbm [resolvable:$true] %s14
      %s16 = sshll.u32 [#allocation2], 4
      %s17 = int_to_ptr.vmem [resolvable:$true] %s16
      %22 = dma.hbm_to_vmem [thread:$0]  %s15, 512, %s17, [#allocation3], 128, 128, 8
    $region5: #{tpu_custom_call.1} parent=1 // pred_fallthru
      _
    // Predicated region
    $region6: #{tpu_custom_call.1} parent=1 // pred_check
      _
    $region7: #{tpu_custom_call.1} parent=1 // pred_check_branch
      %24 = sbr.rel (0) target = $region9
    $region8: #{tpu_custom_call.1} parent=1 // pred_region
      %26 = vsyncadd [#allocation6], 0
      %s27 = sshll.u32 %s1, 4
      %s28 = int_to_ptr.hbm [resolvable:$true] %s27
      %s29 = sshll.u32 [#allocation5], 4
      %s30 = int_to_ptr.vmem [resolvable:$true] %s29
      %35 = dma.hbm_to_vmem [thread:$0]  %s28, 512, %s30, [#allocation6], 128, 128, 8
    $region9: #{tpu_custom_call.1} parent=1 // pred_fallthru
      _
    // Predicated region
    $region10: #{tpu_custom_call.1} parent=1 // pred_check
      _
    $region11: #{tpu_custom_call.1} parent=1 // pred_check_branch
      %37 = sbr.rel (0) target = $region13
    $region12: #{tpu_custom_call.1} parent=1 // pred_region
      %39 = dma.done [#allocation3], 512
    $region13: #{tpu_custom_call.1} parent=1 // pred_fallthru
      _
    // Predicated region
    $region14: #{tpu_custom_call.1} parent=1 // pred_check
      _
    $region15: #{tpu_custom_call.1} parent=1 // pred_check_branch
      %41 = sbr.rel (0) target = $region17
    $region16: #{tpu_custom_call.1} parent=1 // pred_region
      %43 = dma.done [#allocation6], 512
    $region17: #{tpu_custom_call.1} parent=1 // pred_fallthru
      _
    %p44 = scmp.eq.s32.totalorder 0, 0
    // Predicated region
    $region18: #{tpu_custom_call.1} parent=1 // pred_check
      %p45 = pneg %p44
    $region19: #{tpu_custom_call.1} parent=1 // pred_check_branch
      %47 = sbr.rel (%p45) target = $region21
    $region20: #{tpu_custom_call.1} parent=1 // pred_region
      %48 = vst [vmem:[#allocation7] sm:$0xff] 0.0
    $region21: #{tpu_custom_call.1} parent=1 // pred_fallthru
      _
    %v49 = vld [vmem:[#allocation2] sm:$0xff]
    %v50 = vld [vmem:[#allocation2 + $0x8] sm:$0xff]
    %v51 = vld [vmem:[#allocation2 + $0x10] sm:$0xff]
    %v52 = vld [vmem:[#allocation2 + $0x18] sm:$0xff]
    %v53 = vld [vmem:[#allocation5] sm:$0xff]
    %v54 = vld [vmem:[#allocation5 + $0x8] sm:$0xff]
    %v55 = vld [vmem:[#allocation5 + $0x10] sm:$0xff]
    %v56 = vld [vmem:[#allocation5 + $0x18] sm:$0xff]
    %v57 = vsub.f32 %v49, %v53
    %v58 = vsub.f32 %v50, %v54
    %v59 = vsub.f32 %v51, %v55
    %v60 = vsub.f32 %v52, %v56
    %vm61 = vcmp.eq.f32.partialorder %v53, 1.0
    %vm62 = vcmp.eq.f32.partialorder %v54, 1.0
    %vm63 = vcmp.eq.f32.partialorder %v55, 1.0
    %vm64 = vcmp.eq.f32.partialorder %v56, 1.0
    %vm65 = vcmp.eq.f32.partialorder %v53, 0.0
    %vm66 = vcmp.eq.f32.partialorder %v54, 0.0
    %vm67 = vcmp.eq.f32.partialorder %v55, 0.0
    %vm68 = vcmp.eq.f32.partialorder %v56, 0.0
    %v69 = vsel %vm65, 0.3, 0.0
    %v70 = vsel %vm66, 0.3, 0.0
    %v71 = vsel %vm67, 0.3, 0.0
    %v72 = vsel %vm68, 0.3, 0.0
    %v73 = vsel %vm61, 0.7, %v69
    %v74 = vsel %vm62, 0.7, %v70
    %v75 = vsel %vm63, 0.7, %v71
    %v76 = vsel %vm64, 0.7, %v72
    %v77 = vmul.f32 %v57, %v57
    %v78 = vmul.f32 %v58, %v58
    %v79 = vmul.f32 %v59, %v59
    %v80 = vmul.f32 %v60, %v60
    %v81 = vmul.f32 %v77, %v73
    %v82 = vmul.f32 %v78, %v74
    %v83 = vmul.f32 %v79, %v75
    %v84 = vmul.f32 %v80, %v76
    %v85 = vld [vmem:[#allocation7] sm:$0xff]
    %v86 = vadd.f32 %v81, %v82
    %v87 = vadd.f32 %v86, %v83
    %v88 = vadd.f32 %v87, %v84
    %v89 = vadd.f32 %v85, %v88
    %90 = vst [vmem:[#allocation7] sm:$0xff] %v89
    // Predicated region
    $region22: #{tpu_custom_call.1} parent=1 // pred_check
      _
    $region23: #{tpu_custom_call.1} parent=1 // pred_check_branch
      %92 = sbr.rel (0) target = $region25
    $region24: #{tpu_custom_call.1} parent=1 // pred_region
      %94 = vsyncadd [#allocation4], 0
      %s96 = sshll.u32 [#allocation7], 4
      %s97 = int_to_ptr.vmem [resolvable:$true] %s96
      %s98 = sshll.u32 %s2, 4
      %s99 = int_to_ptr.hbm [resolvable:$true] %s98
      %101 = dma.vmem_to_hbm [thread:$0]  %s97, 128, %s99, [#allocation4]
    $region25: #{tpu_custom_call.1} parent=1 // pred_fallthru
      _
    // Predicated region
    $region26: #{tpu_custom_call.1} parent=1 // pred_check
      _
    $region27: #{tpu_custom_call.1} parent=1 // pred_check_branch
      %103 = sbr.rel (0) target = $region29
    $region28: #{tpu_custom_call.1} parent=1 // pred_region
      %105 = dma.done [#allocation4], 128
    $region29: #{tpu_custom_call.1} parent=1 // pred_fallthru
      _
    %106 = vsyncpa [#allocation3], 1
    %107 = vsyncpa [#allocation6], 1
    %108 = vsyncpa [#allocation4], 1

</llo_original>
